<compile_context>
chip_gen: v7x
topology: tpu7x:2x2x1
jax: 0.10.0
libtpu: 0.0.40
codegen_flags: <defaults>
</compile_context>

<pallas_src>
import functools

import jax
import jax.numpy as jnp
from jax import lax
from jax.experimental import pallas as pl
from jax.experimental.pallas import tpu as pltpu

EPS = 1e-5  # torch.nn.LayerNorm default


def _round_up(x, m):
    return ((x + m - 1) // m) * m


def _prenorm_kernel(x_ref, gamma_ref, beta_ref, w_ref, b_ref, o_ref, *, d_real):
    # x_ref: (TM, Dp)   gamma/beta/b: (1, Dp)   w: (Dp_in, Dp_out) -- pre-transposed.
    x = x_ref[...].astype(jnp.float32)
    inv_d = jnp.float32(1.0 / d_real)

    # --- LayerNorm stats, single pass (pad columns of x are zero) ---
    mean = jnp.sum(x, axis=-1, keepdims=True) * inv_d
    var = jnp.sum(x * x, axis=-1, keepdims=True) * inv_d - mean * mean
    var = jnp.maximum(var, 0.0)  # guard one-pass cancellation
    inv_std = lax.rsqrt(var + EPS)

    gamma = gamma_ref[...].astype(jnp.float32)
    beta = beta_ref[...].astype(jnp.float32)

    # Fused normalize + affine; cast to the MXU operand dtype immediately so
    # only one low-precision (TM, Dp) LHS stays live (less VMEM-temp pressure).
    # Pad columns: gamma = beta = 0 there, so y is exactly 0.
    y = (((x - mean) * inv_std) * gamma + beta).astype(w_ref.dtype)

    # --- fn := Linear(dim, dim): canonical (M,K)@(K,N) on the MXU, f32 acc.
    out = jnp.dot(y, w_ref[...], preferred_element_type=jnp.float32)
    o_ref[...] = (out + b_ref[...].astype(jnp.float32)).astype(o_ref.dtype)


def prenorm_fn(x, gamma, beta, w, b, *, block_rows=512, matmul_dtype=jnp.bfloat16):
    """x: (B, S, D); gamma/beta: (D,); w: (D_out, D_in) torch Linear layout; b: (D_out,)."""
    B, S, D = x.shape
    N = B * S

    # Lane-dense feature dim: pad only when D is not already a multiple of 128.
    Dp = _round_up(D, 128)

    x2 = x.reshape(N, D)
    if Dp != D:
        # Zero-pad features + params so pad columns contribute nothing.
        x2 = jnp.pad(x2, ((0, 0), (0, Dp - D)))
        gamma = jnp.pad(gamma, (0, Dp - D))
        beta = jnp.pad(beta, (0, Dp - D))
        b = jnp.pad(b, (0, Dp - D))
        w = jnp.pad(w, ((0, Dp - D), (0, Dp - D)))
    g2 = gamma.reshape(1, Dp)
    be2 = beta.reshape(1, Dp)
    b2 = b.reshape(1, Dp)
    # Pre-transpose once in the wrapper: kernel sees W as (K=D_in, N=D_out).
    w2 = w.T.astype(matmul_dtype)

    x_bytes = jnp.dtype(x.dtype).itemsize
    w_bytes = Dp * Dp * jnp.dtype(matmul_dtype).itemsize

    # Row tile: multiple of 8 (sublane tiling), VMEM-budget aware, and giving
    # the grid >= 2 steps when N allows (v7x has 2 TensorCores per chip).
    TM = max(8, _round_up(min(block_rows, _round_up(N, 8)), 8))
    VMEM_BUDGET = 48 * 1024 * 1024

    def _vmem_est(tm):
        return (2 * 2 * tm * Dp * x_bytes      # x + out tiles, double-buffered
                + 4 * tm * Dp * 4              # in-kernel f32 temporaries headroom
                + w_bytes + 3 * Dp * 4)        # resident W / gamma / beta / bias

    while TM > 8 and _vmem_est(TM) > VMEM_BUDGET:
        TM = max(8, _round_up(TM // 2, 8))
    if N > 8 and pl.cdiv(N, TM) < 2:
        TM = max(8, _round_up(pl.cdiv(N, 2), 8))

    grid = (pl.cdiv(N, TM),)
    vmem_limit = int(min(max(_vmem_est(TM) * 5 // 4 + (1 << 20), 16 * 1024 * 1024),
                         64 * 1024 * 1024))

    kernel = functools.partial(_prenorm_kernel, d_real=D)

    flops = int(2 * N * Dp * Dp + 10 * N * Dp)
    bytes_accessed = int(
        N * Dp * x_bytes          # x in
        + N * Dp * x_bytes        # out
        + w_bytes                 # weights (resident, one DMA)
        + 3 * Dp * 4              # gamma / beta / bias
    )

    resident = pl.Buffered(1)  # constant index_map -> no double buffer needed

    out = pl.pallas_call(
        kernel,
        out_shape=jax.ShapeDtypeStruct((N, Dp), x.dtype),
        grid_spec=pltpu.PrefetchScalarGridSpec(
            num_scalar_prefetch=0,
            grid=grid,
            in_specs=[
                pl.BlockSpec((TM, Dp), lambda i: (i, 0)),                          # x: streamed
                pl.BlockSpec((1, Dp), lambda i: (0, 0), pipeline_mode=resident),   # gamma
                pl.BlockSpec((1, Dp), lambda i: (0, 0), pipeline_mode=resident),   # beta
                pl.BlockSpec((Dp, Dp), lambda i: (0, 0), pipeline_mode=resident),  # W (K, N)
                pl.BlockSpec((1, Dp), lambda i: (0, 0), pipeline_mode=resident),   # bias
            ],
            out_specs=pl.BlockSpec((TM, Dp), lambda i: (i, 0)),
        ),
        compiler_params=pltpu.CompilerParams(
            dimension_semantics=("parallel",),   # rows independent -> megacore / 2-TC split
            vmem_limit_bytes=vmem_limit,
        ),
        cost_estimate=pl.CostEstimate(
            flops=flops, transcendentals=0, bytes_accessed=bytes_accessed),
    )(x2, g2, be2, w2, b2)

    if Dp != D:
        out = out[:, :D]
    return out.reshape(B, S, D)


def _reference(x, gamma, beta, w, b, matmul_dtype=jnp.bfloat16):
    # Matches kernel precision: f32 LayerNorm stats, bf16 matmul operands, f32 accum.
    x32 = x.astype(jnp.float32)
    mean = jnp.mean(x32, axis=-1, keepdims=True)
    c = x32 - mean
    var = jnp.mean(c * c, axis=-1, keepdims=True)
    y = c * lax.rsqrt(var + EPS) * gamma + beta
    out = jnp.einsum(
        "bsd,od->bso",
        y.astype(matmul_dtype), w.astype(matmul_dtype),
        preferred_element_type=jnp.float32,
    )
    return (out + b).astype(x.dtype)


if __name__ == "__main__":
    key = jax.random.PRNGKey(0)
    B, S, D = 2, 8, 32

    kx, kw, kb = jax.random.split(key, 3)
    x = jax.random.normal(kx, (B, S, D), dtype=jnp.float32)

    # LayerNorm params: PyTorch default init (weight=1, bias=0).
    gamma = jnp.ones((D,), dtype=jnp.float32)
    beta = jnp.zeros((D,), dtype=jnp.float32)

    # fn := Linear(D, D), deterministic init (torch (out, in) layout).
    w = jax.random.normal(kw, (D, D), dtype=jnp.float32) * 0.02
    b = jax.random.normal(kb, (D,), dtype=jnp.float32) * 0.01

    out = prenorm_fn(x, gamma, beta, w, b)
    out = jax.block_until_ready(out)

    ref = _reference(x, gamma, beta, w, b)
    assert out.shape == (B, S, D), out.shape
    assert jnp.allclose(out, ref, atol=2e-3, rtol=2e-3), "mismatch vs reference"

    print("KERNEL_OK")
</pallas_src>

<mosaic_0001>
module attributes {stable_mosaic.version = 11 : i64} {
  func.func @_prenorm_kernel(%arg0: i32, %arg1: memref<8x128xf32, #tpu.memory_space<vmem>>, %arg2: memref<1x128xf32, #tpu.memory_space<vmem>>, %arg3: memref<1x128xf32, #tpu.memory_space<vmem>>, %arg4: memref<128x128xbf16, #tpu.memory_space<vmem>>, %arg5: memref<1x128xf32, #tpu.memory_space<vmem>>, %arg6: memref<8x128xf32, #tpu.memory_space<vmem>>) attributes {dimension_semantics = [#tpu.dimension_semantics<parallel>], iteration_bounds = array<i64: 2>, scalar_prefetch = 0 : i64, scratch_operands = 0 : i64, tpu.core_type = #tpu.core_type<tc>, window_params = [{transform_indices = @transform_0, window_bounds = array<i64: 8, 128>}, {pipeline_mode = #tpu.pipeline_mode<synchronous>, transform_indices = @transform_1, window_bounds = array<i64: 1, 128>}, {pipeline_mode = #tpu.pipeline_mode<synchronous>, transform_indices = @transform_2, window_bounds = array<i64: 1, 128>}, {pipeline_mode = #tpu.pipeline_mode<synchronous>, transform_indices = @transform_3, window_bounds = array<i64: 128, 128>}, {pipeline_mode = #tpu.pipeline_mode<synchronous>, transform_indices = @transform_4, window_bounds = array<i64: 1, 128>}, {transform_indices = @transform_5, window_bounds = array<i64: 8, 128>}]} {
    %c0 = arith.constant 0 : index
    %c0_0 = arith.constant 0 : index
    %0 = vector.load %arg1[%c0, %c0_0] : memref<8x128xf32, #tpu.memory_space<vmem>>, vector<8x128xf32>
    %cst = arith.constant dense<0.000000e+00> : vector<8xf32>
    %1 = vector.multi_reduction <add>, %0, %cst [1] : vector<8x128xf32> to vector<8xf32>
    %2 = vector.shape_cast %1 : vector<8xf32> to vector<8x1xf32>
    %cst_1 = arith.constant 3.125000e-02 : f32
    %3 = vector.broadcast %cst_1 : f32 to vector<8x1xf32>
    %4 = arith.mulf %2, %3 : vector<8x1xf32>
    %5 = arith.mulf %0, %0 : vector<8x128xf32>
    %cst_2 = arith.constant dense<0.000000e+00> : vector<8xf32>
    %6 = vector.multi_reduction <add>, %5, %cst_2 [1] : vector<8x128xf32> to vector<8xf32>
    %7 = vector.shape_cast %6 : vector<8xf32> to vector<8x1xf32>
    %cst_3 = arith.constant 3.125000e-02 : f32
    %8 = vector.broadcast %cst_3 : f32 to vector<8x1xf32>
    %9 = arith.mulf %7, %8 : vector<8x1xf32>
    %10 = arith.mulf %4, %4 : vector<8x1xf32>
    %11 = arith.subf %9, %10 : vector<8x1xf32>
    %cst_4 = arith.constant 0.000000e+00 : f32
    %12 = vector.broadcast %cst_4 : f32 to vector<8x1xf32>
    %13 = arith.maximumf %11, %12 : vector<8x1xf32>
    %cst_5 = arith.constant 9.99999974E-6 : f32
    %14 = vector.broadcast %cst_5 : f32 to vector<8x1xf32>
    %15 = arith.addf %13, %14 : vector<8x1xf32>
    %16 = math.rsqrt %15 : vector<8x1xf32>
    %c0_6 = arith.constant 0 : index
    %c0_7 = arith.constant 0 : index
    %17 = vector.load %arg2[%c0_6, %c0_7] : memref<1x128xf32, #tpu.memory_space<vmem>>, vector<1x128xf32>
    %c0_8 = arith.constant 0 : index
    %c0_9 = arith.constant 0 : index
    %18 = vector.load %arg3[%c0_8, %c0_9] : memref<1x128xf32, #tpu.memory_space<vmem>>, vector<1x128xf32>
    %19 = vector.broadcast %4 : vector<8x1xf32> to vector<8x128xf32>
    %20 = arith.subf %0, %19 : vector<8x128xf32>
    %21 = vector.broadcast %16 : vector<8x1xf32> to vector<8x128xf32>
    %22 = arith.mulf %20, %21 : vector<8x128xf32>
    %23 = vector.broadcast %17 : vector<1x128xf32> to vector<8x128xf32>
    %24 = arith.mulf %22, %23 : vector<8x128xf32>
    %25 = vector.broadcast %18 : vector<1x128xf32> to vector<8x128xf32>
    %26 = arith.addf %24, %25 : vector<8x128xf32>
    %27 = arith.truncf %26 : vector<8x128xf32> to vector<8x128xbf16>
    %c0_10 = arith.constant 0 : index
    %c0_11 = arith.constant 0 : index
    %28 = vector.load %arg4[%c0_10, %c0_11] : memref<128x128xbf16, #tpu.memory_space<vmem>>, vector<128x128xbf16>
    %cst_12 = arith.constant dense<0.000000e+00> : vector<8x128xf32>
    %29 = tpu.matmul %27, %28, %cst_12 {dimension_numbers = #tpu.dot_dimension_numbers<[1], [0], [0], [1], [0, 0, 1, 1], [], []>} : vector<8x128xbf16>, vector<128x128xbf16>, vector<8x128xf32> -> vector<8x128xf32>
    %c0_13 = arith.constant 0 : index
    %c0_14 = arith.constant 0 : index
    %30 = vector.load %arg5[%c0_13, %c0_14] : memref<1x128xf32, #tpu.memory_space<vmem>>, vector<1x128xf32>
    %31 = vector.broadcast %30 : vector<1x128xf32> to vector<8x128xf32>
    %32 = arith.addf %29, %31 : vector<8x128xf32>
    %c0_15 = arith.constant 0 : index
    %c0_16 = arith.constant 0 : index
    %33 = vector.load %arg6[%c0_15, %c0_16] : memref<8x128xf32, #tpu.memory_space<vmem>>, vector<8x128xf32>
    tpu.vector_store %arg6[%c0_15, %c0_16], %32 {strides = array<i32>} : memref<8x128xf32, #tpu.memory_space<vmem>>, vector<8x128xf32>,
    return
  }
  func.func @transform_0(%arg0: i32) -> (i32, i32) {
    %c0_i32 = arith.constant 0 : i32
    %c0_i32_0 = arith.constant 0 : i32
    return %arg0, %c0_i32 : i32, i32
  }
  func.func @transform_1(%arg0: i32) -> (i32, i32) {
    %c0_i32 = arith.constant 0 : i32
    %c0_i32_0 = arith.constant 0 : i32
    %c0_i32_1 = arith.constant 0 : i32
    return %c0_i32, %c0_i32_0 : i32, i32
  }
  func.func @transform_2(%arg0: i32) -> (i32, i32) {
    %c0_i32 = arith.constant 0 : i32
    %c0_i32_0 = arith.constant 0 : i32
    %c0_i32_1 = arith.constant 0 : i32
    return %c0_i32, %c0_i32_0 : i32, i32
  }
  func.func @transform_3(%arg0: i32) -> (i32, i32) {
    %c0_i32 = arith.constant 0 : i32
    %c0_i32_0 = arith.constant 0 : i32
    %c0_i32_1 = arith.constant 0 : i32
    return %c0_i32, %c0_i32_0 : i32, i32
  }
  func.func @transform_4(%arg0: i32) -> (i32, i32) {
    %c0_i32 = arith.constant 0 : i32
    %c0_i32_0 = arith.constant 0 : i32
    %c0_i32_1 = arith.constant 0 : i32
    return %c0_i32, %c0_i32_0 : i32, i32
  }
  func.func @transform_5(%arg0: i32) -> (i32, i32) {
    %c0_i32 = arith.constant 0 : i32
    %c0_i32_0 = arith.constant 0 : i32
    return %arg0, %c0_i32 : i32, i32
  }
}

</mosaic_0001>

<llo_original>
// kernel: tpu_custom_call.1
$region0: #{tpu_custom_call.1}
  #allocation0 [shape = 'u32[]', space=smem, size = 0x4, offset = 0x4, fixed_abs, tag = 'smem constant byte address 0x4 - core index']
  #allocation1 [shape = 'u32[144,128]{1,0:T(1,128)}', space=vmem, size = 0x12000, scoped, tag = 'internal scratch']
  %s0 = inlined_call_operand.hbm [shape: f32[16,128], index: 0, kind: input, shape index: {}]
  %s1 = inlined_call_operand.vmem [shape: f32[1,128], index: 1, kind: input, shape index: {}]
  %s2 = inlined_call_operand.vmem [shape: f32[1,128], index: 2, kind: input, shape index: {}]
  %s3 = inlined_call_operand.hbm [shape: bf16[128,128], index: 3, kind: input, shape index: {}]
  %s4 = inlined_call_operand.vmem [shape: f32[1,128], index: 4, kind: input, shape index: {}]
  %s5 = inlined_call_operand.hbm [shape: f32[16,128], index: 5, kind: output, shape index: {}]
  %s6 = sld [smem:[#allocation0]]
  $region61: #{tpu_custom_call.1} parent=0
    _
  %s8 = ssub.s32 1, %s6
  %s9 = scalar_select 0, %s8, %s6
  $region1: #{tpu_custom_call.1} parent=0
    #allocation2 [shape = 'u8[8192]{0}', space=vmem, size = 0x2000, scoped, tag = 'input window, operand 0']
    #allocation3 [shape = 's32[2]{0}', space=sflag, size = 0x8, scoped, tag = 'scoped memory for tpu_custom_call.1']
    #allocation4 [shape = 's32[2]{0}', space=sflag, size = 0x8, scoped, tag = 'scoped memory for tpu_custom_call.1']
    #allocation5 [shape = 'u8[32768]{0}', space=vmem, size = 0x8000, scoped, tag = 'input window, operand 3, single buffered']
    #allocation6 [shape = 's32[1]{0}', space=sflag, size = 0x4, scoped, tag = 'scoped memory for tpu_custom_call.1']
    #allocation7 [shape = 'u8[8192]{0}', space=vmem, size = 0x2000, scoped, tag = 'output window, operand 0']
    %10 = vsyncpa [#allocation3], 0
    %s11 = scalar_lea.sflag [#allocation3], 1
    %12 = vsyncpa %s11, 0
    %13 = vsyncpa [#allocation6], 0
    %14 = vsyncpa [#allocation4], 0
    %s15 = scalar_lea.sflag [#allocation4], 1
    %16 = vsyncpa %s15, 0
    loop: start=0, step=1, limit=4
    $region2: #{tpu_custom_call.1} parent=1 // loop_pre_header
      _
    $region3: #{tpu_custom_call.1} parent=1 // loop_header
      %s18 = sphi 0, %s22
      %p19 = scmp.ge.s32.totalorder %s18, 4
      %s28 = sphi 0, %s30
      %s31 = sphi 0, %s28
      %s32 = sphi 0, %s31
      %s48 = sphi 0, %s32
      %s52 = sphi 0, %s52
      %s54 = sphi 0, %s52
      %s55 = sphi 0, %s54
      %s69 = sphi 0, %s55
      %s73 = sphi 0, %s73
      %s75 = sphi 0, %s73
      %s76 = sphi 0, %s75
      %s90 = sphi 0, %s76
      %s94 = sphi 0, %s94
      %s96 = sphi 0, %s94
      %s97 = sphi 0, %s96
      %s111 = sphi 0, %s97
      %s115 = sphi 0, %s115
      %s117 = sphi 0, %s115
      %s118 = sphi 0, %s117
      %s132 = sphi 0, %s118
      %s138 = sphi 0, %s140
      %s141 = sphi 0, %s138
      %s142 = sphi 0, %s141
      %s158 = sphi 0, %s142
    $region4: #{tpu_custom_call.1} parent=1 // loop_header_branch
      %21 = sbr.rel (%p19) target = $region8
    $region5: #{tpu_custom_call.1} parent=1 // loop_body
      %s23 = ssub.s32 %s18, 1
      %s24 = ssub.s32 %s18, 2
      %s25 = sadd.s32 %s18, 1
      %s26 = ssub.s32 %s18, %s25
      %p27 = scmp.eq.s32.totalorder %s26, 0
      %s29 = sadd.s32 %s28, 1
      %s30 = scalar_select %p27, %s28, %s29
      %p33 = pneg %p27
      %p34 = scmp.eq.s32.totalorder %s18, 1
      %p35 = por %p33, %p34
      %p36 = scmp.ne.s32.totalorder %s28, %s31
      %p37 = scmp.eq.s32.totalorder %s18, 0
      %p38 = por %p36, %p37
      %p39 = scmp.ne.s32.totalorder %s28, %s31
      %p40 = scmp.eq.s32.totalorder %s23, 1
      %p41 = por %p39, %p40
      %p42 = scmp.ne.s32.totalorder %s31, %s32
      %p43 = scmp.eq.s32.totalorder %s23, 0
      %p44 = por %p42, %p43
      %p45 = scmp.ne.s32.totalorder %s31, %s32
      %p46 = scmp.eq.s32.totalorder %s24, 1
      %p47 = por %p45, %p46
      %p49 = scmp.ne.s32.totalorder %s32, %s48
      %p50 = scmp.eq.s32.totalorder %s24, 0
      %p51 = por %p49, %p50
      %s53 = sadd.s32 %s52, 1
      %p56 = scmp.eq.s32.totalorder %s18, 1
      %p57 = scmp.ne.s32.totalorder %s52, %s54
      %p58 = scmp.eq.s32.totalorder %s18, 0
      %p59 = por %p57, %p58
      %p60 = scmp.ne.s32.totalorder %s52, %s54
      %p61 = scmp.eq.s32.totalorder %s23, 1
      %p62 = por %p60, %p61
      %p63 = scmp.ne.s32.totalorder %s54, %s55
      %p64 = scmp.eq.s32.totalorder %s23, 0
      %p65 = por %p63, %p64
      %p66 = scmp.ne.s32.totalorder %s54, %s55
      %p67 = scmp.eq.s32.totalorder %s24, 1
      %p68 = por %p66, %p67
      %p70 = scmp.ne.s32.totalorder %s55, %s69
      %p71 = scmp.eq.s32.totalorder %s24, 0
      %p72 = por %p70, %p71
      %s74 = sadd.s32 %s73, 1
      %p77 = scmp.eq.s32.totalorder %s18, 1
      %p78 = scmp.ne.s32.totalorder %s73, %s75
      %p79 = scmp.eq.s32.totalorder %s18, 0
      %p80 = por %p78, %p79
      %p81 = scmp.ne.s32.totalorder %s73, %s75
      %p82 = scmp.eq.s32.totalorder %s23, 1
      %p83 = por %p81, %p82
      %p84 = scmp.ne.s32.totalorder %s75, %s76
      %p85 = scmp.eq.s32.totalorder %s23, 0
      %p86 = por %p84, %p85
      %p87 = scmp.ne.s32.totalorder %s75, %s76
      %p88 = scmp.eq.s32.totalorder %s24, 1
      %p89 = por %p87, %p88
      %p91 = scmp.ne.s32.totalorder %s76, %s90
      %p92 = scmp.eq.s32.totalorder %s24, 0
      %p93 = por %p91, %p92
      %s95 = sadd.s32 %s94, 1
      %p98 = scmp.eq.s32.totalorder %s18, 1
      %p99 = scmp.ne.s32.totalorder %s94, %s96
      %p100 = scmp.eq.s32.totalorder %s18, 0
      %p101 = por %p99, %p100
      %p102 = scmp.ne.s32.totalorder %s94, %s96
      %p103 = scmp.eq.s32.totalorder %s23, 1
      %p104 = por %p102, %p103
      %p105 = scmp.ne.s32.totalorder %s96, %s97
      %p106 = scmp.eq.s32.totalorder %s23, 0
      %p107 = por %p105, %p106
      %p108 = scmp.ne.s32.totalorder %s96, %s97
      %p109 = scmp.eq.s32.totalorder %s24, 1
      %p110 = por %p108, %p109
      %p112 = scmp.ne.s32.totalorder %s97, %s111
      %p113 = scmp.eq.s32.totalorder %s24, 0
      %p114 = por %p112, %p113
      %s116 = sadd.s32 %s115, 1
      %p119 = scmp.eq.s32.totalorder %s18, 1
      %p120 = scmp.ne.s32.totalorder %s115, %s117
      %p121 = scmp.eq.s32.totalorder %s18, 0
      %p122 = por %p120, %p121
      %p123 = scmp.ne.s32.totalorder %s115, %s117
      %p124 = scmp.eq.s32.totalorder %s23, 1
      %p125 = por %p123, %p124
      %p126 = scmp.ne.s32.totalorder %s117, %s118
      %p127 = scmp.eq.s32.totalorder %s23, 0
      %p128 = por %p126, %p127
      %p129 = scmp.ne.s32.totalorder %s117, %s118
      %p130 = scmp.eq.s32.totalorder %s24, 1
      %p131 = por %p129, %p130
      %p133 = scmp.ne.s32.totalorder %s118, %s132
      %p134 = scmp.eq.s32.totalorder %s24, 0
      %p135 = por %p133, %p134
      %s136 = ssub.s32 %s18, %s25
      %p137 = scmp.eq.s32.totalorder %s136, 0
      %s139 = sadd.s32 %s138, 1
      %s140 = scalar_select %p137, %s138, %s139
      %p143 = pneg %p137
      %p144 = scmp.eq.s32.totalorder %s18, 1
      %p145 = por %p143, %p144
      %p146 = scmp.ne.s32.totalorder %s138, %s141
      %p147 = scmp.eq.s32.totalorder %s18, 0
      %p148 = por %p146, %p147
      %p149 = scmp.ne.s32.totalorder %s138, %s141
      %p150 = scmp.eq.s32.totalorder %s23, 1
      %p151 = por %p149, %p150
      %p152 = scmp.ne.s32.totalorder %s141, %s142
      %p153 = scmp.eq.s32.totalorder %s23, 0
      %p154 = por %p152, %p153
      %p155 = scmp.ne.s32.totalorder %s141, %s142
      %p156 = scmp.eq.s32.totalorder %s24, 1
      %p157 = por %p155, %p156
      %p159 = scmp.ne.s32.totalorder %s142, %s158
      %p160 = scmp.eq.s32.totalorder %s24, 0
      %p161 = por %p159, %p160
      %p162 = scmp.le.s32.totalorder 1, %s18
      %p163 = scmp.lt.s32.totalorder %s18, 3
      %p164 = pnand %p162, %p163
      %p165 = pneg %p164
      // Predicated region
      $region9: #{tpu_custom_call.1} parent=5 // pred_check
        _
      $region10: #{tpu_custom_call.1} parent=5 // pred_check_branch
        %167 = sbr.rel (%p164) target = $region12
      $region11: #{tpu_custom_call.1} parent=5 // pred_region
        %s168 = ssub.s32 %s18, 1
        // Predicated region
        $region13: #{tpu_custom_call.1} parent=11 // pred_check
          %p169 = pneg %p65
        $region14: #{tpu_custom_call.1} parent=11 // pred_check_branch
          %171 = sbr.rel (%p169) target = $region16
        $region15: #{tpu_custom_call.1} parent=11 // pred_region
          _
        $region16: #{tpu_custom_call.1} parent=11 // pred_fallthru
          _
        // Predicated region
        $region17: #{tpu_custom_call.1} parent=11 // pred_check
          %p172 = pneg %p86
        $region18: #{tpu_custom_call.1} parent=11 // pred_check_branch
          %174 = sbr.rel (%p172) target = $region20
        $region19: #{tpu_custom_call.1} parent=11 // pred_region
          _
        $region20: #{tpu_custom_call.1} parent=11 // pred_fallthru
          _
        // Predicated region
        $region21: #{tpu_custom_call.1} parent=11 // pred_check
          %p175 = pneg %p107
        $region22: #{tpu_custom_call.1} parent=11 // pred_check_branch
          %177 = sbr.rel (%p175) target = $region24
        $region23: #{tpu_custom_call.1} parent=11 // pred_region
          %s179 = ssub.s32 1024, 1024
          %180 = vsyncadd [#allocation6], %s179
          %s181 = sshll.u32 [#allocation5], 4
          %s182 = int_to_ptr.vmem [resolvable:$true] %s181
          %187 = dma.hbm_to_vmem [thread:$0]  %s3, 1024, %s182, [#allocation6], 64, 64, 4
        $region24: #{tpu_custom_call.1} parent=11 // pred_fallthru
          _
        // Predicated region
        $region25: #{tpu_custom_call.1} parent=11 // pred_check
          %p188 = pneg %p128
        $region26: #{tpu_custom_call.1} parent=11 // pred_check_branch
          %190 = sbr.rel (%p188) target = $region28
        $region27: #{tpu_custom_call.1} parent=11 // pred_region
          _
        $region28: #{tpu_custom_call.1} parent=11 // pred_fallthru
          _
      $region12: #{tpu_custom_call.1} parent=5 // pred_fallthru
        _
      %p191 = scmp.lt.s32.totalorder %s18, 2
      // Predicated region
      $region29: #{tpu_custom_call.1} parent=5 // pred_check
        %p192 = pneg %p191
      $region30: #{tpu_custom_call.1} parent=5 // pred_check_branch
        %194 = sbr.rel (%p192) target = $region32
      $region31: #{tpu_custom_call.1} parent=5 // pred_region
        // Predicated region
        $region33: #{tpu_custom_call.1} parent=31 // pred_check
          %p195 = pneg %p38
        $region34: #{tpu_custom_call.1} parent=31 // pred_check_branch
          %197 = sbr.rel (%p195) target = $region36
        $region35: #{tpu_custom_call.1} parent=31 // pred_region
          %s198 = sand.u32 %s28, 1
          %s199 = scalar_lea.sflag [#allocation3], %s198
          %s200 = sand.u32 %s28, 1
          %s201 = smul.addr %s200, 8
          %s202 = scalar_lea.vmem [#allocation2], %s201
          %s204 = ssub.s32 128, 128
          %205 = vsyncadd %s199, %s204
          %s206 = smul.addr %s18, 128
          %s207 = scalar_lea.hbm %s0, %s206
          %s209 = sshll.u32 %s202, 4
          %s210 = int_to_ptr.vmem [resolvable:$true] %s209
          %212 = dma.hbm_to_vmem [thread:$0]  %s207, 128, %s210, %s199
        $region36: #{tpu_custom_call.1} parent=31 // pred_fallthru
          _
      $region32: #{tpu_custom_call.1} parent=5 // pred_fallthru
        _
      %p213 = scmp.le.s32.totalorder 1, %s18
      %p214 = scmp.lt.s32.totalorder %s18, 3
      %p215 = pnand %p213, %p214
      %p216 = pneg %p215
      // Predicated region
      $region37: #{tpu_custom_call.1} parent=5 // pred_check
        _
      $region38: #{tpu_custom_call.1} parent=5 // pred_check_branch
        %218 = sbr.rel (%p215) target = $region40
      $region39: #{tpu_custom_call.1} parent=5 // pred_region
        %s219 = ssub.s32 %s18, 1
        %s220 = sand.u32 %s31, 1
        %s221 = scalar_lea.sflag [#allocation3], %s220
        %s222 = sand.u32 %s31, 1
        %s223 = smul.addr %s222, 8
        %s224 = scalar_lea.vmem [#allocation2], %s223
        // Predicated region
        $region41: #{tpu_custom_call.1} parent=39 // pred_check
          %p225 = pneg %p44
        $region42: #{tpu_custom_call.1} parent=39 // pred_check_branch
          %227 = sbr.rel (%p225) target = $region44
        $region43: #{tpu_custom_call.1} parent=39 // pred_region
          %228 = dma.done %s221, 128
        $region44: #{tpu_custom_call.1} parent=39 // pred_fallthru
          _
        // Predicated region
        $region45: #{tpu_custom_call.1} parent=39 // pred_check
          %p229 = pneg %p107
        $region46: #{tpu_custom_call.1} parent=39 // pred_check_branch
          %231 = sbr.rel (%p229) target = $region48
        $region47: #{tpu_custom_call.1} parent=39 // pred_region
          %232 = dma.done [#allocation6], 1024
        $region48: #{tpu_custom_call.1} parent=39 // pred_fallthru
          _
        %s233 = sand.u32 %s31, 1
        %s234 = scalar_lea.sflag [#allocation3], %s233
        %s235 = sand.u32 %s31, 1
        %s236 = smul.addr %s235, 8
        %s237 = scalar_lea.vmem [#allocation2], %s236
        %p238 = pneg %p44
        %p239 = pneg %p41
        %p240 = pneg %p65
        %p241 = pneg %p62
        %p242 = pneg %p86
        %p243 = pneg %p83
        %p244 = pneg %p107
        %p245 = pneg %p104
        %p246 = pneg %p128
        %p247 = pneg %p125
        %p248 = pneg %p154
        %p249 = pneg %p151
        %s250 = sand.u32 %s141, 1
        %s251 = scalar_lea.sflag [#allocation4], %s250
        %s252 = sand.u32 %s141, 1
        %s253 = smul.addr %s252, 8
        %s254 = scalar_lea.vmem [#allocation7], %s253
        %v256 = vld [vmem:[%s224] sm:$0xff]
        %257 = vadd.xlane.f32.xlu0 %v256
        %v258 = vpop.xlane.xlu0 %257
        %v259 = vmul.f32 %v258, 0.03125
        %v260 = vmul.f32 %v256, %v256
        %261 = vadd.xlane.f32.xlu0 %v260
        %v262 = vpop.xlane.xlu0 %261
        %v263 = vmul.f32 %v262, 0.03125
        %v264 = vmul.f32 %v259, %v259
        %v265 = vsub.f32 %v263, %v264
        %v266 = vmax.f32 %v265, 0.0
        %v267 = vadd.f32 %v266, 1e-05
        %v268 = vrsqrt.pop %v267
        %v269 = vld [vmem:[%s1] sm:$0x1]
        %v270 = vld [vmem:[%s2] sm:$0x1]
        %v271 = vsub.f32 %v256, %v259
        %v272 = vmul.f32 %v271, %v268
        %v274 = vlaneseq
        %v275 = vshrl.u32 %v274, 7
        %v276 = vsub.s32 0, %v275
        %v277 = vrot.slane %v269, %v276
        %v279 = vmul.f32 %v272, %v277
        %v281 = vlaneseq
        %v282 = vshrl.u32 %v281, 7
        %v283 = vsub.s32 0, %v282
        %v284 = vrot.slane %v270, %v283
        %v286 = vadd.f32 %v279, %v284
        %v287 = vpack.c.bf16 %v286, %v286
        %v288 = vld [vmem:[#allocation5] sm:$0xf]
        %v289 = vld [vmem:[#allocation5 + $0x4] sm:$0xf]
        %v290 = vld [vmem:[#allocation5 + $0x8] sm:$0xf]
        %v291 = vld [vmem:[#allocation5 + $0xc] sm:$0xf]
        %v292 = vld [vmem:[#allocation5 + $0x10] sm:$0xf]
        %v293 = vld [vmem:[#allocation5 + $0x14] sm:$0xf]
        %v294 = vld [vmem:[#allocation5 + $0x18] sm:$0xf]
        %v295 = vld [vmem:[#allocation5 + $0x1c] sm:$0xf]
        %v296 = vld [vmem:[#allocation5 + $0x20] sm:$0xf]
        %v297 = vld [vmem:[#allocation5 + $0x24] sm:$0xf]
        %v298 = vld [vmem:[#allocation5 + $0x28] sm:$0xf]
        %v299 = vld [vmem:[#allocation5 + $0x2c] sm:$0xf]
        %v300 = vld [vmem:[#allocation5 + $0x30] sm:$0xf]
        %v301 = vld [vmem:[#allocation5 + $0x34] sm:$0xf]
        %v302 = vld [vmem:[#allocation5 + $0x38] sm:$0xf]
        %v303 = vld [vmem:[#allocation5 + $0x3c] sm:$0xf]
        %v304 = vld [vmem:[%s4] sm:$0x1]
        %v306 = vlaneseq
        %v307 = vshrl.u32 %v306, 7
        %v308 = vsub.s32 0, %v307
        %v309 = vrot.slane %v304, %v308
        %v327 = vunpack.c.l.b16 %v288
        %v328 = vunpack.c.l.b16 %v289
        %v329 = vunpack.c.l.b16 %v290
        %v330 = vunpack.c.l.b16 %v291
        %v331 = vunpack.c.l.b16 %v292
        %v332 = vunpack.c.l.b16 %v293
        %v333 = vunpack.c.l.b16 %v294
        %v334 = vunpack.c.l.b16 %v295
        %v335 = vunpack.c.l.b16 %v296
        %v336 = vunpack.c.l.b16 %v297
        %v337 = vunpack.c.l.b16 %v298
        %v338 = vunpack.c.l.b16 %v299
        %v339 = vunpack.c.l.b16 %v300
        %v340 = vunpack.c.l.b16 %v301
        %v341 = vunpack.c.l.b16 %v302
        %v342 = vunpack.c.l.b16 %v303
        %v343 = vpack.c.b16 %v328, %v327
        %v344 = vpack.c.b16 %v330, %v329
        %v345 = vpack.c.b16 %v332, %v331
        %v346 = vpack.c.b16 %v334, %v333
        %v347 = vpack.c.b16 %v336, %v335
        %v348 = vpack.c.b16 %v338, %v337
        %v349 = vpack.c.b16 %v340, %v339
        %v350 = vpack.c.b16 %v342, %v341
        %359 = vmatprep.subr.bf16.mxu0 0
        %360 = vmatpush1.bf16.msra.mxu0 %v343
        %361 = vmatprep.subr.bf16.mxu0 0
        %362 = vmatpush1.bf16.msra.mxu0 %v344
        %363 = vmatprep.subr.bf16.mxu0 0
        %364 = vmatpush1.bf16.msra.mxu0 %v345
        %365 = vmatprep.subr.bf16.mxu0 0
        %366 = vmatpush1.bf16.msra.mxu0 %v346
        %367 = vmatprep.subr.bf16.mxu0 0
        %368 = vmatpush1.bf16.msra.mxu0 %v347
        %369 = vmatprep.subr.bf16.mxu0 0
        %370 = vmatpush1.bf16.msra.mxu0 %v348
        %371 = vmatprep.subr.bf16.mxu0 0
        %372 = vmatpush1.bf16.msra.mxu0 %v349
        %373 = vmatprep.subr.bf16.mxu0 0
        %374 = vmatpush1.bf16.msra.mxu0 %v350
        %375 = vmatprep.subr.bf16.mxu0 0
        %376 = vmatpush1.bf16.msra.mxu0 0
        %377 = vmatprep.subr.bf16.mxu0 0
        %378 = vmatpush1.bf16.msra.mxu0 0
        %379 = vmatprep.subr.bf16.mxu0 0
        %380 = vmatpush1.bf16.msra.mxu0 0
        %381 = vmatprep.subr.bf16.mxu0 0
        %382 = vmatpush1.bf16.msra.mxu0 0
        %383 = vmatprep.subr.bf16.mxu0 0
        %384 = vmatpush1.bf16.msra.mxu0 0
        %385 = vmatprep.subr.bf16.mxu0 0
        %386 = vmatpush1.bf16.msra.mxu0 0
        %387 = vmatprep.subr.bf16.mxu0 0
        %388 = vmatpush1.bf16.msra.mxu0 0
        %389 = vmatprep.subr.bf16.mxu0 0
        %390 = vmatpush1.bf16.msra.mxu0 0
        %391 = vmatprep.mubr.bf16.mxu0 0
        %392 = vmatmul.mubr.bf16.gmra.mrb[0].mxu0 %v287
        %v393 = vpop.f32.mrb[0].mxu0
        %v394 = vadd.f32 %v309, %v393
        %v395 = vpop.f32.mrb[0].mxu0
        %v396 = vpop.f32.mrb[0].mxu0
        %v397 = vpop.f32.mrb[0].mxu0
        %398 = vdwg.mxu0
        %399 = vst [vmem:[%s254] sm:$0xff] %v394
        %s400 = sand.u32 %s141, 1
        %s401 = scalar_lea.sflag [#allocation4], %s400
        %s402 = sand.u32 %s141, 1
        %s403 = smul.addr %s402, 8
        %s404 = scalar_lea.vmem [#allocation7], %s403
        // Predicated region
        $region49: #{tpu_custom_call.1} parent=39 // pred_check
          %p405 = pneg %p151
        $region50: #{tpu_custom_call.1} parent=39 // pred_check_branch
          %407 = sbr.rel (%p405) target = $region52
        $region51: #{tpu_custom_call.1} parent=39 // pred_region
          %s409 = ssub.s32 128, 128
          %410 = vsyncadd %s401, %s409
          %s411 = smul.addr %s23, 128
          %s412 = scalar_lea.hbm %s5, %s411
          %s414 = sshll.u32 %s404, 4
          %s415 = int_to_ptr.vmem [resolvable:$true] %s414
          %417 = dma.vmem_to_hbm [thread:$0]  %s415, 128, %s412, %s401
        $region52: #{tpu_custom_call.1} parent=39 // pred_fallthru
          _
      $region40: #{tpu_custom_call.1} parent=5 // pred_fallthru
        _
      %p418 = scmp.le.s32.totalorder 2, %s18
      // Predicated region
      $region53: #{tpu_custom_call.1} parent=5 // pred_check
        %p419 = pneg %p418
      $region54: #{tpu_custom_call.1} parent=5 // pred_check_branch
        %421 = sbr.rel (%p419) target = $region56
      $region55: #{tpu_custom_call.1} parent=5 // pred_region
        %s422 = ssub.s32 %s18, 2
        // Predicated region
        $region57: #{tpu_custom_call.1} parent=55 // pred_check
          %p423 = pneg %p157
        $region58: #{tpu_custom_call.1} parent=55 // pred_check_branch
          %425 = sbr.rel (%p423) target = $region60
        $region59: #{tpu_custom_call.1} parent=55 // pred_region
          %s426 = sand.u32 %s142, 1
          %s427 = scalar_lea.sflag [#allocation4], %s426
          %s428 = sand.u32 %s142, 1
          %s429 = smul.addr %s428, 8
          %s430 = scalar_lea.vmem [#allocation7], %s429
          %431 = dma.done %s427, 128
        $region60: #{tpu_custom_call.1} parent=55 // pred_fallthru
          _
      $region56: #{tpu_custom_call.1} parent=5 // pred_fallthru
        _
    $region6: #{tpu_custom_call.1} parent=1 // loop_footer
      %s22 = sadd.s32 1, %s18
    $region7: #{tpu_custom_call.1} parent=1 // loop_footer_branch
      %17 = sbr.rel target = $region3
    $region8: #{tpu_custom_call.1} parent=1 // loop_exit
      _
    %432 = vsyncpa [#allocation3], 1
    %s433 = scalar_lea.sflag [#allocation3], 1
    %434 = vsyncpa %s433, 1
    %435 = vsyncpa [#allocation6], 1
    %436 = vsyncpa [#allocation4], 1
    %s437 = scalar_lea.sflag [#allocation4], 1
    %438 = vsyncpa %s437, 1

</llo_original>
